<compile_context>
chip_gen: v7x
topology: tpu7x:2x2x1
jax: 0.10.0
libtpu: 0.0.40
codegen_flags: <defaults>
</compile_context>

<pallas_src>
import jax
import jax.numpy as jnp
from jax.experimental import pallas as pl
from jax.experimental.pallas import tpu as pltpu


def _clip_embedding_kernel(tok_ref, emb_hbm, pos_ref, out_ref, gather_buf, sems):
    # tok_ref:    (B*T,) int32 in SMEM (scalar-prefetch)
    # emb_hbm:    (V, E) raw HBM ref (memory_space=pl.ANY) — gathered row by row via DMA
    # pos_ref:    (T, E) in VMEM
    # out_ref:    (1, T, E) in VMEM (one batch row per grid step)
    # gather_buf: (T, E) VMEM scratch holding the gathered embedding rows
    # sems:       (T,) DMA semaphores (one per in-flight row copy)
    b = pl.program_id(0)
    T, E = gather_buf.shape
    V = emb_hbm.shape[0]

    def row_copy(t, row):
        return pltpu.make_async_copy(
            emb_hbm.at[pl.ds(row, 1), :],
            gather_buf.at[pl.ds(t, 1), :],
            sems.at[t],
        )

    # Issue all T row fetches; they stay in flight together (latency hiding).
    @pl.loop(0, T)
    def _(t):
        row = tok_ref[b * T + t]
        # nn.Embedding raises on out-of-range ids; clamp instead of an OOB DMA.
        row = jnp.minimum(jnp.maximum(row, 0), V - 1)
        row_copy(t, row).start()

    # Wait for all fetches (only the semaphore + copy shape matter for wait).
    @pl.loop(0, T)
    def _(t):
        row_copy(t, 0).wait()

    # Fused position-embedding add (f32), single block store.
    out_ref[0] = (gather_buf[...] + pos_ref[...]).astype(out_ref.dtype)


def clip_embedding(tokens, emb_table, pos_emb):
    B, T = tokens.shape
    V, E = emb_table.shape
    assert pos_emb.shape == (T, E)
    tokens_flat = tokens.reshape(B * T).astype(jnp.int32)

    grid_spec = pltpu.PrefetchScalarGridSpec(
        num_scalar_prefetch=1,
        grid=(B,),
        in_specs=[
            pl.BlockSpec(memory_space=pl.ANY),             # embedding table stays in HBM
            pl.BlockSpec((T, E), lambda b, tok: (0, 0)),   # position embedding (resident)
        ],
        out_specs=pl.BlockSpec((1, T, E), lambda b, tok: (b, 0, 0)),
        scratch_shapes=[
            pltpu.VMEM((T, E), emb_table.dtype),
            pltpu.SemaphoreType.DMA((T,)),
        ],
    )

    return pl.pallas_call(
        _clip_embedding_kernel,
        out_shape=jax.ShapeDtypeStruct((B, T, E), emb_table.dtype),
        grid_spec=grid_spec,
        compiler_params=pltpu.CompilerParams(
            dimension_semantics=("parallel",),
        ),
    )(tokens_flat, emb_table, pos_emb)


if __name__ == "__main__":
    # Small shapes consistent with the module: vocab=64, embd=32, seq(n_token)=8, batch=2.
    n_vocab, n_embd, n_token, batch = 64, 32, 8, 2

    key = jax.random.PRNGKey(0)
    k_tok, k_emb, k_pos = jax.random.split(key, 3)

    tokens = jax.random.randint(k_tok, (batch, n_token), 0, n_vocab, dtype=jnp.int32)
    # Deterministic synthetic parameters (nn.Embedding weight + nn.Parameter position embedding).
    token_embedding = jax.random.normal(k_emb, (n_vocab, n_embd), dtype=jnp.float32)
    # PyTorch init is zeros; use nonzero values so the broadcast-add is actually exercised.
    position_embedding = jax.random.normal(k_pos, (n_token, n_embd), dtype=jnp.float32)

    out = clip_embedding(tokens, token_embedding, position_embedding)
    out = jax.block_until_ready(out)

    # Pure-JAX reference: x = emb[tokens] + pos
    ref = jnp.take(token_embedding, tokens, axis=0) + position_embedding[None, :, :]
    assert out.shape == (batch, n_token, n_embd)
    assert jnp.allclose(out, ref, atol=1e-5, rtol=1e-5)

    print("KERNEL_OK")
</pallas_src>

<mosaic_0001>
module attributes {stable_mosaic.version = 11 : i64} {
  func.func @_clip_embedding_kernel(%arg0: i32, %arg1: memref<16xi32, #tpu.memory_space<smem>>, %arg2: memref<64x32xf32, #tpu.memory_space<any>>, %arg3: memref<8x32xf32, #tpu.memory_space<vmem>>, %arg4: memref<1x8x32xf32, #tpu.memory_space<vmem>>, %arg5: memref<8x32xf32, #tpu.memory_space<vmem>>, %arg6: memref<8x!tpu.dma_semaphore, #tpu.memory_space<semaphore_mem>>) attributes {dimension_semantics = [#tpu.dimension_semantics<parallel>], iteration_bounds = array<i64: 2>, scalar_prefetch = 1 : i64, scratch_operands = 2 : i64, tpu.core_type = #tpu.core_type<tc>, window_params = [{}, {pipeline_mode = #tpu.pipeline_mode<synchronous>, transform_indices = @transform_1, window_bounds = array<i64: 8, 32>}, {transform_indices = @transform_2, window_bounds = array<i64: 1, 8, 32>}]} {
    %c0_i32 = arith.constant 0 : i32
    %c8_i32 = arith.constant 8 : i32
    %0 = arith.addi %c0_i32, %c8_i32 : i32
    %c1_i32 = arith.constant 1 : i32
    scf.for %arg7 = %c0_i32 to %0 step %c1_i32  : i32 {
      %c1_i32_11 = arith.constant 1 : i32
      %8 = arith.muli %arg7, %c1_i32_11 : i32
      %c0_i32_12 = arith.constant 0 : i32
      %9 = arith.addi %c0_i32_12, %8 : i32
      %c8_i32_13 = arith.constant 8 : i32
      %10 = arith.muli %arg0, %c8_i32_13 : i32
      %11 = arith.addi %10, %9 : i32
      %12 = arith.index_cast %11 : i32 to index
      %13 = memref.load %arg1[%12] : memref<16xi32, #tpu.memory_space<smem>>
      %c0_i32_14 = arith.constant 0 : i32
      %14 = arith.maxsi %13, %c0_i32_14 : i32
      %c63_i32 = arith.constant 63 : i32
      %15 = arith.minsi %14, %c63_i32 : i32
      %c0_i32_15 = arith.constant 0 : i32
      %16 = tpu.memref_slice %arg2[%15, %c0_i32_15] : memref<64x32xf32, #tpu.memory_space<any>> -> memref<1x32xf32, #tpu.memory_space<any>>
      %c0_i32_16 = arith.constant 0 : i32
      %17 = tpu.memref_slice %arg5[%9, %c0_i32_16] : memref<8x32xf32, #tpu.memory_space<vmem>> -> memref<1x32xf32, #tpu.memory_space<vmem>>
      %18 = tpu.memref_slice %arg6[%9] : memref<8x!tpu.dma_semaphore, #tpu.memory_space<semaphore_mem>> -> memref<1x!tpu.dma_semaphore, #tpu.memory_space<semaphore_mem>>
      %19 = tpu.memref_squeeze %18 : memref<1x!tpu.dma_semaphore, #tpu.memory_space<semaphore_mem>> -> memref<!tpu.dma_semaphore, #tpu.memory_space<semaphore_mem>>
      tpu.enqueue_dma source(%16 : memref<1x32xf32, #tpu.memory_space<any>>) target(%17 : memref<1x32xf32, #tpu.memory_space<vmem>>) target_semaphore(%19 : memref<!tpu.dma_semaphore, #tpu.memory_space<semaphore_mem>>)
    }
    %c8_i32_0 = arith.constant 8 : i32
    %c0_i32_1 = arith.constant 0 : i32
    %c8_i32_2 = arith.constant 8 : i32
    %1 = arith.addi %c0_i32_1, %c8_i32_2 : i32
    %c1_i32_3 = arith.constant 1 : i32
    scf.for %arg7 = %c0_i32_1 to %1 step %c1_i32_3  : i32 {
      %c1_i32_11 = arith.constant 1 : i32
      %8 = arith.muli %arg7, %c1_i32_11 : i32
      %c0_i32_12 = arith.constant 0 : i32
      %9 = arith.addi %c0_i32_12, %8 : i32
      %c0_i32_13 = arith.constant 0 : i32
      %c0_i32_14 = arith.constant 0 : i32
      %10 = tpu.memref_slice %arg2[%c0_i32_13, %c0_i32_14] : memref<64x32xf32, #tpu.memory_space<any>> -> memref<1x32xf32, #tpu.memory_space<any>>
      %c0_i32_15 = arith.constant 0 : i32
      %11 = tpu.memref_slice %arg5[%9, %c0_i32_15] : memref<8x32xf32, #tpu.memory_space<vmem>> -> memref<1x32xf32, #tpu.memory_space<vmem>>
      %12 = tpu.memref_slice %arg6[%9] : memref<8x!tpu.dma_semaphore, #tpu.memory_space<semaphore_mem>> -> memref<1x!tpu.dma_semaphore, #tpu.memory_space<semaphore_mem>>
      %13 = tpu.memref_squeeze %12 : memref<1x!tpu.dma_semaphore, #tpu.memory_space<semaphore_mem>> -> memref<!tpu.dma_semaphore, #tpu.memory_space<semaphore_mem>>
      tpu.wait_dma2 semaphore(%13 : memref<!tpu.dma_semaphore, #tpu.memory_space<semaphore_mem>>) src(%10 : memref<1x32xf32, #tpu.memory_space<any>>) dst(%11 : memref<1x32xf32, #tpu.memory_space<vmem>>)
    }
    %c8_i32_4 = arith.constant 8 : i32
    %c0 = arith.constant 0 : index
    %c0_5 = arith.constant 0 : index
    %2 = vector.load %arg5[%c0, %c0_5] : memref<8x32xf32, #tpu.memory_space<vmem>>, vector<8x32xf32>
    %c0_6 = arith.constant 0 : index
    %c0_7 = arith.constant 0 : index
    %3 = vector.load %arg3[%c0_6, %c0_7] : memref<8x32xf32, #tpu.memory_space<vmem>>, vector<8x32xf32>
    %4 = arith.addf %2, %3 : vector<8x32xf32>
    %c0_8 = arith.constant 0 : index
    %c0_9 = arith.constant 0 : index
    %c0_10 = arith.constant 0 : index
    %5 = vector.load %arg4[%c0_8, %c0_9, %c0_10] : memref<1x8x32xf32, #tpu.memory_space<vmem>>, vector<1x8x32xf32>
    %6 = vector.shape_cast %5 : vector<1x8x32xf32> to vector<8x32xf32>
    %7 = vector.shape_cast %4 : vector<8x32xf32> to vector<1x8x32xf32>
    tpu.vector_store %arg4[%c0_8, %c0_9, %c0_10], %7 {strides = array<i32>} : memref<1x8x32xf32, #tpu.memory_space<vmem>>, vector<1x8x32xf32>,
    return
  }
  func.func @transform_1(%arg0: i32, %arg1: memref<16xi32, #tpu.memory_space<smem>>) -> (i32, i32) {
    %c0_i32 = arith.constant 0 : i32
    %c0_i32_0 = arith.constant 0 : i32
    %c0_i32_1 = arith.constant 0 : i32
    return %c0_i32, %c0_i32_0 : i32, i32
  }
  func.func @transform_2(%arg0: i32, %arg1: memref<16xi32, #tpu.memory_space<smem>>) -> (i32, i32, i32) {
    %c0_i32 = arith.constant 0 : i32
    %c0_i32_0 = arith.constant 0 : i32
    %c0_i32_1 = arith.constant 0 : i32
    return %arg0, %c0_i32, %c0_i32_0 : i32, i32, i32
  }
}

</mosaic_0001>

<llo_original>
// kernel: tpu_custom_call.1
$region0: #{tpu_custom_call.1}
  #allocation0 [shape = 'u32[]', space=smem, size = 0x4, offset = 0x4, fixed_abs, tag = 'smem constant byte address 0x4 - core index']
  #allocation1 [shape = 'u32[144,128]{1,0:T(1,128)}', space=vmem, size = 0x12000, scoped, tag = 'internal scratch']
  #allocation2 [shape = 'f32[8,32]{1,0:T(8,128)}', space=vmem, size = 0x1000, scoped, tag = 'scratch operand']
  #allocation3 [shape = 's32[8]{0}', space=sflag, size = 0x20, scoped, tag = 'scratch operand']
  #allocation4 [shape = 's32[1]{0}', space=sflag, size = 0x4, scoped, tag = 'scoped memory for tpu_custom_call.1']
  #allocation5 [shape = 'u8[512]{0}', space=smem, size = 0x200, scoped, tag = 'prefetched SMEM operand 0']
  #allocation8 [shape = 's32[]', space=sflag, size = 0x4, offset = 0, fixed_abs, tag = 'sflag constant byte address 0x0 - dummy sync flag']
  %s0 = inlined_call_operand.vmem [shape: s32[16], index: 0, kind: input, shape index: {}]
  %s1 = inlined_call_operand.vmem [shape: f32[64,32], index: 1, kind: input, shape index: {}]
  %s2 = inlined_call_operand.vmem [shape: f32[8,32], index: 2, kind: input, shape index: {}]
  %s3 = inlined_call_operand.hbm [shape: f32[2,8,32], index: 3, kind: output, shape index: {}]
  %s4 = sld [smem:[#allocation0]]
  $region81: #{tpu_custom_call.1} parent=0
    _
  %s6 = ssub.s32 1, %s4
  %s7 = scalar_select 0, %s6, %s4
  %s8 = sshll.u32 %s0, 4
  %s9 = int_to_ptr.vmem [resolvable:$true] %s8
  %11 = dma.vmem_to_smem %s9, 16, [#allocation5], [#allocation4]
  %12 = dma.done [#allocation4], 16
  %13 = sfence
  $region1: #{tpu_custom_call.1} parent=0
    #allocation6 [shape = 'u8[8192]{0}', space=vmem, size = 0x2000, scoped, tag = 'output window, operand 0']
    #allocation7 [shape = 's32[2]{0}', space=sflag, size = 0x8, scoped, tag = 'scoped memory for tpu_custom_call.1']
    %14 = vsyncpa [#allocation7], 0
    %s15 = scalar_lea.sflag [#allocation7], 1
    %16 = vsyncpa %s15, 0
    loop: start=0, step=1, limit=4
    $region2: #{tpu_custom_call.1} parent=1 // loop_pre_header
      _
    $region3: #{tpu_custom_call.1} parent=1 // loop_header
      %s18 = sphi 0, %s22
      %p19 = scmp.ge.s32.totalorder %s18, 4
      %s26 = sphi 0, %s26
      %s28 = sphi 0, %s26
      %s29 = sphi 0, %s28
      %s43 = sphi 0, %s29
      %s49 = sphi 0, %s51
      %s52 = sphi 0, %s49
      %s53 = sphi 0, %s52
      %s69 = sphi 0, %s53
    $region4: #{tpu_custom_call.1} parent=1 // loop_header_branch
      %21 = sbr.rel (%p19) target = $region8
    $region5: #{tpu_custom_call.1} parent=1 // loop_body
      %s23 = ssub.s32 %s18, 1
      %s24 = ssub.s32 %s18, 2
      %s25 = sadd.s32 %s18, 1
      %s27 = sadd.s32 %s26, 1
      %p30 = scmp.eq.s32.totalorder %s18, 1
      %p31 = scmp.ne.s32.totalorder %s26, %s28
      %p32 = scmp.eq.s32.totalorder %s18, 0
      %p33 = por %p31, %p32
      %p34 = scmp.ne.s32.totalorder %s26, %s28
      %p35 = scmp.eq.s32.totalorder %s23, 1
      %p36 = por %p34, %p35
      %p37 = scmp.ne.s32.totalorder %s28, %s29
      %p38 = scmp.eq.s32.totalorder %s23, 0
      %p39 = por %p37, %p38
      %p40 = scmp.ne.s32.totalorder %s28, %s29
      %p41 = scmp.eq.s32.totalorder %s24, 1
      %p42 = por %p40, %p41
      %p44 = scmp.ne.s32.totalorder %s29, %s43
      %p45 = scmp.eq.s32.totalorder %s24, 0
      %p46 = por %p44, %p45
      %s47 = ssub.s32 %s18, %s25
      %p48 = scmp.eq.s32.totalorder %s47, 0
      %s50 = sadd.s32 %s49, 1
      %s51 = scalar_select %p48, %s49, %s50
      %p54 = pneg %p48
      %p55 = scmp.eq.s32.totalorder %s18, 1
      %p56 = por %p54, %p55
      %p57 = scmp.ne.s32.totalorder %s49, %s52
      %p58 = scmp.eq.s32.totalorder %s18, 0
      %p59 = por %p57, %p58
      %p60 = scmp.ne.s32.totalorder %s49, %s52
      %p61 = scmp.eq.s32.totalorder %s23, 1
      %p62 = por %p60, %p61
      %p63 = scmp.ne.s32.totalorder %s52, %s53
      %p64 = scmp.eq.s32.totalorder %s23, 0
      %p65 = por %p63, %p64
      %p66 = scmp.ne.s32.totalorder %s52, %s53
      %p67 = scmp.eq.s32.totalorder %s24, 1
      %p68 = por %p66, %p67
      %p70 = scmp.ne.s32.totalorder %s53, %s69
      %p71 = scmp.eq.s32.totalorder %s24, 0
      %p72 = por %p70, %p71
      %p73 = scmp.le.s32.totalorder 1, %s18
      %p74 = scmp.lt.s32.totalorder %s18, 3
      %p75 = pnand %p73, %p74
      %p76 = pneg %p75
      // Predicated region
      $region9: #{tpu_custom_call.1} parent=5 // pred_check
        _
      $region10: #{tpu_custom_call.1} parent=5 // pred_check_branch
        %78 = sbr.rel (%p75) target = $region12
      $region11: #{tpu_custom_call.1} parent=5 // pred_region
        %s79 = ssub.s32 %s18, 1
        // Predicated region
        $region13: #{tpu_custom_call.1} parent=11 // pred_check
          %p80 = pneg %p39
        $region14: #{tpu_custom_call.1} parent=11 // pred_check_branch
          %82 = sbr.rel (%p80) target = $region16
        $region15: #{tpu_custom_call.1} parent=11 // pred_region
          _
        $region16: #{tpu_custom_call.1} parent=11 // pred_fallthru
          _
      $region12: #{tpu_custom_call.1} parent=5 // pred_fallthru
        _
      %p83 = scmp.lt.s32.totalorder %s18, 2
      // Predicated region
      $region17: #{tpu_custom_call.1} parent=5 // pred_check
        %p84 = pneg %p83
      $region18: #{tpu_custom_call.1} parent=5 // pred_check_branch
        %86 = sbr.rel (%p84) target = $region20
      $region19: #{tpu_custom_call.1} parent=5 // pred_region
        _
      $region20: #{tpu_custom_call.1} parent=5 // pred_fallthru
        _
      %p87 = scmp.le.s32.totalorder 1, %s18
      %p88 = scmp.lt.s32.totalorder %s18, 3
      %p89 = pnand %p87, %p88
      %p90 = pneg %p89
      // Predicated region
      $region21: #{tpu_custom_call.1} parent=5 // pred_check
        _
      $region22: #{tpu_custom_call.1} parent=5 // pred_check_branch
        %92 = sbr.rel (%p89) target = $region24
      $region23: #{tpu_custom_call.1} parent=5 // pred_region
        %s93 = ssub.s32 %s18, 1
        %p94 = pneg %p39
        %p95 = pneg %p36
        %p96 = pneg %p65
        %p97 = pneg %p62
        %s98 = sand.u32 %s52, 1
        %s99 = scalar_lea.sflag [#allocation7], %s98
        %s100 = sand.u32 %s52, 1
        %s101 = smul.addr %s100, 8
        %s102 = scalar_lea.vmem [#allocation6], %s101
        loop: start=0, step=1, limit=8
        $region25: #{tpu_custom_call.1} parent=23 // loop_pre_header
          _
        $region26: #{tpu_custom_call.1} parent=23 // loop_header
          %s104 = sphi 0, %s108
          %p105 = scmp.ge.s32.totalorder %s104, 8
        $region27: #{tpu_custom_call.1} parent=23 // loop_header_branch
          %107 = sbr.rel (%p105) target = $region31
        $region28: #{tpu_custom_call.1} parent=23 // loop_body
          %s109 = smul.u32 %s23, 8
          %s110 = sadd.s32 %s109, %s104
          %s111 = sld [smem:[#allocation5 + %s110]]
          %p112 = scmp.gt.s32.totalorder %s111, 0
          %s113 = scalar_select %p112, %s111, 0
          %p114 = scmp.lt.s32.totalorder %s113, 63
          %s115 = scalar_select %p114, %s113, 63
          %s116 = scalar_lea.vmem %s1, %s115
          %s117 = scalar_lea.vmem [#allocation2], %s104
          %s118 = scalar_lea.sflag [#allocation3], %s104
          %p120 = scmp.lt.u32.totalorder 1, 8
          %p121 = pneg %p120
          // Predicated region
          $region32: #{tpu_custom_call.1} parent=28 // pred_check
            _
          $region33: #{tpu_custom_call.1} parent=28 // pred_check_branch
            %123 = sbr.rel (%p120) target = $region35
          $region34: #{tpu_custom_call.1} parent=28 // pred_region
            %s138 = sand.u32 1, 7
            %p139 = scmp.eq.s32.totalorder %s138, 0
            %p140 = pneg %p139
            // Predicated region
            $region47: #{tpu_custom_call.1} parent=34 // pred_check
              _
            $region48: #{tpu_custom_call.1} parent=34 // pred_check_branch
              %142 = sbr.rel (%p139) target = $region50
            $region49: #{tpu_custom_call.1} parent=34 // pred_region
              %s143 = sand.u32 1, 7
              %s144 = ssub.s32 1, %s143
              %s145 = scalar_lea.vmem %s116, %s144
              %s146 = ssub.s32 1, %s143
              %s147 = scalar_lea.vmem %s117, %s146 [#allocation2]
              %s148 = sshllo.u32 0, %s143
              loop: start=0, step=1, limit=1
              $region51: #{tpu_custom_call.1} parent=49 // loop_pre_header
                _
              $region52: #{tpu_custom_call.1} parent=49 // loop_header
                %s150 = sphi 0, %s154
                %p151 = scmp.ge.s32.totalorder %s150, 1
                %s155 = sphi %s145, %s145
                %s156 = sphi %s147, %s147
              $region53: #{tpu_custom_call.1} parent=49 // loop_header_branch
                %153 = sbr.rel (%p151) target = $region57
              $region54: #{tpu_custom_call.1} parent=49 // loop_body
                %v157 = vld [vmem:[%s155] sm:%s148]
                %158 = vst [vmem:[%s156] sm:%s148] %v157
              $region55: #{tpu_custom_call.1} parent=49 // loop_footer
                %s154 = sadd.s32 1, %s150
              $region56: #{tpu_custom_call.1} parent=49 // loop_footer_branch
                %149 = sbr.rel target = $region52
              $region57: #{tpu_custom_call.1} parent=49 // loop_exit
                _
            $region50: #{tpu_custom_call.1} parent=34 // pred_fallthru
              _
          $region35: #{tpu_custom_call.1} parent=28 // pred_fallthru
            _
          // Predicated region
          $region36: #{tpu_custom_call.1} parent=28 // pred_check
            %p124 = pneg %p120
          $region37: #{tpu_custom_call.1} parent=28 // pred_check_branch
            %126 = sbr.rel (%p124) target = $region39
          $region38: #{tpu_custom_call.1} parent=28 // pred_region
            %s127 = sshllo.u32 0, 1
            loop: start=0, step=1, limit=1
            $region40: #{tpu_custom_call.1} parent=38 // loop_pre_header
              _
            $region41: #{tpu_custom_call.1} parent=38 // loop_header
              %s129 = sphi 0, %s133
              %p130 = scmp.ge.s32.totalorder %s129, 1
              %s134 = sphi %s116, %s116
              %s135 = sphi %s117, %s117
            $region42: #{tpu_custom_call.1} parent=38 // loop_header_branch
              %132 = sbr.rel (%p130) target = $region46
            $region43: #{tpu_custom_call.1} parent=38 // loop_body
              %v136 = vld [vmem:[%s134] sm:%s127]
              %137 = vst [vmem:[%s135] sm:%s127] %v136
            $region44: #{tpu_custom_call.1} parent=38 // loop_footer
              %s133 = sadd.s32 1, %s129
            $region45: #{tpu_custom_call.1} parent=38 // loop_footer_branch
              %128 = sbr.rel target = $region41
            $region46: #{tpu_custom_call.1} parent=38 // loop_exit
              _
          $region39: #{tpu_custom_call.1} parent=28 // pred_fallthru
            _
          // Predicated region
          $region58: #{tpu_custom_call.1} parent=28 // pred_check
            _
          $region59: #{tpu_custom_call.1} parent=28 // pred_check_branch
            %161 = sbr.rel (0) target = $region61
          $region60: #{tpu_custom_call.1} parent=28 // pred_region
            %162 = vsyncadd %s118, 16
          $region61: #{tpu_custom_call.1} parent=28 // pred_fallthru
            _
        $region29: #{tpu_custom_call.1} parent=23 // loop_footer
          %s108 = sadd.s32 1, %s104
        $region30: #{tpu_custom_call.1} parent=23 // loop_footer_branch
          %103 = sbr.rel target = $region26
        $region31: #{tpu_custom_call.1} parent=23 // loop_exit
          _
        loop: start=0, step=1, limit=8
        $region62: #{tpu_custom_call.1} parent=23 // loop_pre_header
          _
        $region63: #{tpu_custom_call.1} parent=23 // loop_header
          %s164 = sphi 0, %s168
          %p165 = scmp.ge.s32.totalorder %s164, 8
        $region64: #{tpu_custom_call.1} parent=23 // loop_header_branch
          %167 = sbr.rel (%p165) target = $region68
        $region65: #{tpu_custom_call.1} parent=23 // loop_body
          %s169 = scalar_lea.sflag [#allocation3], %s164
          %s170 = smul.u32 1, 1
          %s171 = sshll.u32 %s170, 4
          %172 = dma.done %s169, %s171
        $region66: #{tpu_custom_call.1} parent=23 // loop_footer
          %s168 = sadd.s32 1, %s164
        $region67: #{tpu_custom_call.1} parent=23 // loop_footer_branch
          %163 = sbr.rel target = $region63
        $region68: #{tpu_custom_call.1} parent=23 // loop_exit
          _
        %v173 = vld [vmem:[#allocation2] sm:$0xff]
        %v174 = vld [vmem:[%s2] sm:$0xff]
        %v175 = vadd.f32 %v173, %v174
        %vm176 = vcmask 261120
        %177 = vst.msk [vmem:[%s102] sm:$0xff] %vm176, %v175
        %s178 = sand.u32 %s52, 1
        %s179 = scalar_lea.sflag [#allocation7], %s178
        %s180 = sand.u32 %s52, 1
        %s181 = smul.addr %s180, 8
        %s182 = scalar_lea.vmem [#allocation6], %s181
        // Predicated region
        $region69: #{tpu_custom_call.1} parent=23 // pred_check
          %p183 = pneg %p62
        $region70: #{tpu_custom_call.1} parent=23 // pred_check_branch
          %185 = sbr.rel (%p183) target = $region72
        $region71: #{tpu_custom_call.1} parent=23 // pred_region
          %s187 = ssub.s32 128, 128
          %188 = vsyncadd %s179, %s187
          %s189 = smul.addr %s23, 128
          %s190 = scalar_lea.hbm %s3, %s189
          %s192 = sshll.u32 %s182, 4
          %s193 = int_to_ptr.vmem [resolvable:$true] %s192
          %195 = dma.vmem_to_hbm [thread:$0]  %s193, 128, %s190, %s179
        $region72: #{tpu_custom_call.1} parent=23 // pred_fallthru
          _
      $region24: #{tpu_custom_call.1} parent=5 // pred_fallthru
        _
      %p196 = scmp.le.s32.totalorder 2, %s18
      // Predicated region
      $region73: #{tpu_custom_call.1} parent=5 // pred_check
        %p197 = pneg %p196
      $region74: #{tpu_custom_call.1} parent=5 // pred_check_branch
        %199 = sbr.rel (%p197) target = $region76
      $region75: #{tpu_custom_call.1} parent=5 // pred_region
        %s200 = ssub.s32 %s18, 2
        // Predicated region
        $region77: #{tpu_custom_call.1} parent=75 // pred_check
          %p201 = pneg %p68
        $region78: #{tpu_custom_call.1} parent=75 // pred_check_branch
          %203 = sbr.rel (%p201) target = $region80
        $region79: #{tpu_custom_call.1} parent=75 // pred_region
          %s204 = sand.u32 %s53, 1
          %s205 = scalar_lea.sflag [#allocation7], %s204
          %s206 = sand.u32 %s53, 1
          %s207 = smul.addr %s206, 8
          %s208 = scalar_lea.vmem [#allocation6], %s207
          %209 = dma.done %s205, 128
        $region80: #{tpu_custom_call.1} parent=75 // pred_fallthru
          _
      $region76: #{tpu_custom_call.1} parent=5 // pred_fallthru
        _
    $region6: #{tpu_custom_call.1} parent=1 // loop_footer
      %s22 = sadd.s32 1, %s18
    $region7: #{tpu_custom_call.1} parent=1 // loop_footer_branch
      %17 = sbr.rel target = $region3
    $region8: #{tpu_custom_call.1} parent=1 // loop_exit
      _
    %210 = vsyncpa [#allocation7], 1
    %s211 = scalar_lea.sflag [#allocation7], 1
    %212 = vsyncpa %s211, 1
  %213 = vsyncmov [#allocation3]
  %s214 = vpop.sfrf %213
  %p215 = scmp.eq.s32.totalorder %s214, 0
  %p216 = pneg %p215
  %218 = shalt.err (%p216)
  %s219 = scalar_lea.sflag [#allocation3], 1
  %220 = vsyncmov %s219
  %s221 = vpop.sfrf %220
  %p222 = scmp.eq.s32.totalorder %s221, 0
  %p223 = pneg %p222
  %225 = shalt.err (%p223)
  %s226 = scalar_lea.sflag [#allocation3], 2
  %227 = vsyncmov %s226
  %s228 = vpop.sfrf %227
  %p229 = scmp.eq.s32.totalorder %s228, 0
  %p230 = pneg %p229
  %232 = shalt.err (%p230)
  %s233 = scalar_lea.sflag [#allocation3], 3
  %234 = vsyncmov %s233
  %s235 = vpop.sfrf %234
  %p236 = scmp.eq.s32.totalorder %s235, 0
  %p237 = pneg %p236
  %239 = shalt.err (%p237)
  %s240 = scalar_lea.sflag [#allocation3], 4
  %241 = vsyncmov %s240
  %s242 = vpop.sfrf %241
  %p243 = scmp.eq.s32.totalorder %s242, 0
  %p244 = pneg %p243
  %246 = shalt.err (%p244)
  %s247 = scalar_lea.sflag [#allocation3], 5
  %248 = vsyncmov %s247
  %s249 = vpop.sfrf %248
  %p250 = scmp.eq.s32.totalorder %s249, 0
  %p251 = pneg %p250
  %253 = shalt.err (%p251)
  %s254 = scalar_lea.sflag [#allocation3], 6
  %255 = vsyncmov %s254
  %s256 = vpop.sfrf %255
  %p257 = scmp.eq.s32.totalorder %s256, 0
  %p258 = pneg %p257
  %260 = shalt.err (%p258)
  %s261 = scalar_lea.sflag [#allocation3], 7
  %262 = vsyncmov %s261
  %s263 = vpop.sfrf %262
  %p264 = scmp.eq.s32.totalorder %s263, 0
  %p265 = pneg %p264
  %267 = shalt.err (%p265)

</llo_original>
